<compile_context>
chip_gen: v5e
topology: v5e:2x2
jax: 0.10.0
libtpu: 0.0.40
codegen_flags: <defaults>
</compile_context>

<pallas_src>
import jax
import jax.numpy as jnp
from jax.experimental import pallas as pl
from jax.experimental.pallas import tpu as pltpu

K_NEIGHBOURS = 5


def _tile_n(n, pref=256):
    """Pick an N tile size: `pref` rows if it divides N, else the whole axis."""
    return pref if (n % pref == 0) else n


# ----------------------------------------------------------------------------
# Pallas kernels
# ----------------------------------------------------------------------------
def edgeconv_kernel(xt_ref, xnb_ref,
                    w01, b01, w02, b02, w11, w12, b1112, w2, b2,
                    wc1f, sh1, wc2f, sh2,
                    out_ref):
    """One EdgeConv block, one (batch, N-tile) grid point, all k inside.

    xt_ref  : (1, tn, C)      center point features (bf16)
    xnb_ref : (1, k, tn, C)   features of the k neighbours of every point (bf16)
    out_ref : (1, tn, OUT)    max over k of ReLU(BN(conv1(e))) + ReLU(BN(conv2(h)))
    Weights are bf16 (BN scale pre-folded); biases / shifts are f32.
    """
    f32 = jnp.float32
    bf16 = jnp.bfloat16
    _, k, tn, C = xnb_ref.shape
    out_c = out_ref.shape[-1]

    xt = xt_ref[0]                                   # [tn, C]      bf16
    xnb = xnb_ref[0].reshape(k * tn, C)              # [k*tn, C]    bf16

    # ---- center branch (independent of k: computed once) --------------------
    h = jnp.dot(xt.astype(bf16), w01[...], preferred_element_type=f32) + b01[...]
    hb = h.astype(bf16)
    h2 = jnp.dot(hb, w11[...], preferred_element_type=f32)               # [tn, 2C]
    y2 = jnp.maximum(
        jnp.dot(hb, wc2f[...], preferred_element_type=f32) + sh2[...], 0.0)  # [tn, out]

    # ---- neighbour branch (single flattened M = k*tn matmuls) ---------------
    g = jnp.dot(xnb.astype(bf16), w02[...], preferred_element_type=f32) + b02[...]   # [k*tn, C]
    g2 = jnp.dot(g.astype(bf16), w12[...], preferred_element_type=f32)               # [k*tn, 2C]

    s = g2.reshape(k, tn, 2 * C) + (h2 + b1112[...])[None]               # [k, tn, 2C]
    s = jnp.where(s > 0, s, 0.01 * s)                                    # LeakyReLU(0.01)
    c = jnp.dot(s.reshape(k * tn, 2 * C).astype(bf16), w2[...],
                preferred_element_type=f32) + b2[...]                    # [k*tn, C]

    e = (g.reshape(k, tn, C) - h[None]) * c.reshape(k, tn, C)            # [k, tn, C]
    y1 = jnp.dot(e.reshape(k * tn, C).astype(bf16), wc1f[...],
                 preferred_element_type=f32) + sh1[...]
    y1 = jnp.maximum(y1, 0.0).reshape(k, tn, out_c)                      # [k, tn, out]

    # max_k(relu1_k + relu2) == relu2 + max_k(relu1_k)  (relu2 is k-independent)
    out_ref[0] = y2 + jnp.max(y1, axis=0)


def global_kernel(x4_ref, wconv, bconv, w1bf, bias_g, out_ref, gmax):
    """Conv1d(192->1024) + running max over N tiles, then the mlp1 global-feature
    projection (w1b with BN1 scale folded) applied once on the last tile."""
    f32 = jnp.float32
    nt = pl.program_id(1)

    x4 = x4_ref[0]                                                       # [tn, 192]
    gt = jnp.dot(x4.astype(jnp.bfloat16), wconv[...],
                 preferred_element_type=f32) + bconv[...]                # [tn, 1024]
    tmax = jnp.max(gt, axis=0, keepdims=True)                            # [1, 1024]

    @pl.when(nt == 0)
    def _():
        gmax[...] = tmax

    @pl.when(nt != 0)
    def _():
        gmax[...] = jnp.maximum(gmax[...], tmax)

    @pl.when(nt == pl.num_programs(1) - 1)
    def _():
        out_ref[0] = jnp.dot(gmax[...].astype(jnp.bfloat16), w1bf[...],
                             preferred_element_type=f32) + bias_g[...]   # [1, 256]


def head_kernel(x4_ref, gproj_ref, w1af, w2f, bsh2, w3f, bsh3, w4, b4, out_ref):
    """mlp1..mlp4.  BN scales are folded into the weights; the global-feature
    contribution of mlp1 arrives pre-projected as a per-batch [1, 256] row."""
    f32 = jnp.float32
    bf16 = jnp.bfloat16
    x4 = x4_ref[0]                                                       # [tn, 192]
    gp = gproj_ref[0]                                                    # [1, 256]

    y = jnp.dot(x4.astype(bf16), w1af[...], preferred_element_type=f32) + gp     # mlp1+BN1
    y = jnp.dot(y.astype(bf16), w2f[...], preferred_element_type=f32) + bsh2[...]  # mlp2+BN2
    y = jnp.dot(y.astype(bf16), w3f[...], preferred_element_type=f32) + bsh3[...]  # mlp3+BN3
    y = jnp.dot(y.astype(bf16), w4[...], preferred_element_type=f32) + b4[...]     # mlp4
    out_ref[0] = y


# ----------------------------------------------------------------------------
# JAX glue (KNN + gather, pallas_call wrappers)
# ----------------------------------------------------------------------------
def knn_idx(x, k):
    """x: [B, N, C] (f32) -> neighbour indices [B, N, k] (matches torch knn)."""
    inner = jnp.einsum('bnc,bmc->bnm', x, x)
    sq = jnp.sum(x * x, axis=-1)
    pdist = 2.0 * inner - sq[:, :, None] - sq[:, None, :]   # = -||xi - xj||^2
    # TODO(synk): top-k + data-dependent gather stay in JAX (no clean Pallas TPU
    #             equivalent); an in-kernel DMA gather via scalar-prefetched idx
    #             would remove the k x HBM amplification of xnb.
    return jax.lax.top_k(pdist, k)[1]


_EC_PARAM_NAMES = ['w01', 'b01', 'w02', 'b02', 'w11', 'w12', 'b1112',
                   'w2', 'b2', 'wc1f', 'sh1', 'wc2f', 'sh2']


def edge_conv(x, p, k):
    """x: [B, N, C] (f32) -> [B, N, out_channel] (f32)."""
    B, N, C = x.shape
    out_c = p['wc1f'].shape[1]
    tn = _tile_n(N)

    idx = knn_idx(x, k)                                  # [B, N, k]  (f32 distances)
    idx_t = jnp.transpose(idx, (0, 2, 1))                # [B, k, N]  (cheap, int32)

    # Activations are consumed in bf16 by the MXU anyway -> gather/DMA in bf16
    # (halves HBM traffic for the k-amplified neighbour slab; bit-identical math).
    xb = x.astype(jnp.bfloat16)
    xnb = jax.vmap(lambda feat, ids: feat[ids])(xb, idx_t)  # [B, k, N, C] bf16

    plist = [p[n] for n in _EC_PARAM_NAMES]
    pspecs = [pl.BlockSpec(q.shape, lambda b, nt: (0, 0)) for q in plist]

    return pl.pallas_call(
        edgeconv_kernel,
        out_shape=jax.ShapeDtypeStruct((B, N, out_c), jnp.float32),
        grid_spec=pltpu.PrefetchScalarGridSpec(
            num_scalar_prefetch=0,
            grid=(B, N // tn),
            in_specs=[pl.BlockSpec((1, tn, C), lambda b, nt: (b, nt, 0)),
                      pl.BlockSpec((1, k, tn, C), lambda b, nt: (b, 0, nt, 0))]
                     + pspecs,
            out_specs=pl.BlockSpec((1, tn, out_c), lambda b, nt: (b, nt, 0)),
        ),
        compiler_params=pltpu.CompilerParams(
            dimension_semantics=("parallel", "parallel")),
    )(xb, xnb, *plist)


_GLOB_PARAM_NAMES = ['wconv', 'bconv', 'w1bf', 'bias_g']


def global_feature(x4, gp):
    """x4: [B, N, 192] (bf16) -> [B, 1, 256] (max-pooled global descriptor,
    already projected through the mlp1 global-feature weight + BN1)."""
    B, N, C = x4.shape
    F = gp['wconv'].shape[1]      # 1024
    Fo = gp['w1bf'].shape[1]      # 256
    tn = _tile_n(N)

    plist = [gp[n] for n in _GLOB_PARAM_NAMES]
    pspecs = [pl.BlockSpec(q.shape, lambda b, nt: (0, 0)) for q in plist]

    return pl.pallas_call(
        global_kernel,
        out_shape=jax.ShapeDtypeStruct((B, 1, Fo), jnp.float32),
        grid_spec=pltpu.PrefetchScalarGridSpec(
            num_scalar_prefetch=0,
            grid=(B, N // tn),
            in_specs=[pl.BlockSpec((1, tn, C), lambda b, nt: (b, nt, 0))] + pspecs,
            out_specs=pl.BlockSpec((1, 1, Fo), lambda b, nt: (b, 0, 0)),
            scratch_shapes=[pltpu.VMEM((1, F), jnp.float32)],
        ),
        compiler_params=pltpu.CompilerParams(
            dimension_semantics=("parallel", "arbitrary")),
    )(x4, *plist)


_HEAD_PARAM_NAMES = ['w1af', 'w2f', 'bsh2', 'w3f', 'bsh3', 'w4', 'b4']


def head_mlp(x4, gproj, hp):
    """x4: [B, N, 192] (bf16), gproj: [B, 1, 256] -> [B, N, out_channel]."""
    B, N, C = x4.shape
    Fo = gproj.shape[-1]
    out_c = hp['w4'].shape[1]
    tn = _tile_n(N)

    plist = [hp[n] for n in _HEAD_PARAM_NAMES]
    pspecs = [pl.BlockSpec(q.shape, lambda b, nt: (0, 0)) for q in plist]

    return pl.pallas_call(
        head_kernel,
        out_shape=jax.ShapeDtypeStruct((B, N, out_c), jnp.float32),
        grid_spec=pltpu.PrefetchScalarGridSpec(
            num_scalar_prefetch=0,
            grid=(B, N // tn),
            in_specs=[pl.BlockSpec((1, tn, C), lambda b, nt: (b, nt, 0)),
                      pl.BlockSpec((1, 1, Fo), lambda b, nt: (b, 0, 0))]
                     + pspecs,
            out_specs=pl.BlockSpec((1, tn, out_c), lambda b, nt: (b, nt, 0)),
        ),
        compiler_params=pltpu.CompilerParams(
            dimension_semantics=("parallel", "parallel")),
    )(x4, gproj, *plist)


def dgn_forward(x, params, k=K_NEIGHBOURS):
    """x: [B, C_in, N] (torch convention) -> [B, N, out_channel]."""
    xt = jnp.transpose(x, (0, 2, 1)).astype(jnp.float32)     # [B, N, C_in]
    x1 = edge_conv(xt, params['ec1'], k)                     # [B, N, 64]  f32
    x2 = edge_conv(x1, params['ec2'], k)                     # [B, N, 64]  f32
    x3 = edge_conv(x2, params['ec3'], k)                     # [B, N, 64]  f32
    # x4 is only ever consumed in bf16 (MXU) -> cast once, read by two kernels.
    x4 = jnp.concatenate([x1, x2, x3], axis=-1).astype(jnp.bfloat16)  # [B, N, 192]
    gproj = global_feature(x4, params['glob'])                # [B, 1, 256]
    return head_mlp(x4, gproj, params['head'])                # [B, N, 256]


# ----------------------------------------------------------------------------
# Deterministic parameter initialization (synthetic weights, BN/scale folding
# done host-side, matmul weights stored in bf16)
# ----------------------------------------------------------------------------
def _init_linear(key, in_f, out_f):
    k1, k2 = jax.random.split(key)
    w = jax.random.normal(k1, (in_f, out_f), jnp.float32) * 0.1   # stored as [in, out]
    b = jax.random.normal(k2, (1, out_f), jnp.float32) * 0.1
    return w, b


def _init_bn(key, c, eps=1e-5):
    k1, k2, k3, k4 = jax.random.split(key, 4)
    gamma = 1.0 + 0.1 * jax.random.normal(k1, (1, c), jnp.float32)
    beta = 0.1 * jax.random.normal(k2, (1, c), jnp.float32)
    mean = 0.1 * jax.random.normal(k3, (1, c), jnp.float32)
    var = 1.0 + jnp.abs(jax.random.normal(k4, (1, c), jnp.float32)) * 0.1
    scale = gamma / jnp.sqrt(var + eps)
    shift = beta - mean * scale
    return scale, shift


def _init_edgeconv(key, in_c, out_c):
    ks = jax.random.split(key, 9)
    w01, b01 = _init_linear(ks[0], in_c, in_c)
    w02, b02 = _init_linear(ks[1], in_c, in_c)
    w11, b11 = _init_linear(ks[2], in_c, 2 * in_c)
    w12, b12 = _init_linear(ks[3], in_c, 2 * in_c)
    w2, b2 = _init_linear(ks[4], 2 * in_c, in_c)
    wc1 = jax.random.normal(ks[5], (in_c, out_c), jnp.float32) * 0.1
    wc2 = jax.random.normal(ks[6], (in_c, out_c), jnp.float32) * 0.1
    sc1, sh1 = _init_bn(ks[7], out_c)
    sc2, sh2 = _init_bn(ks[8], out_c)

    bf16 = jnp.bfloat16
    # BN scales folded into the 1x1-conv weights; linear11/linear12 biases merged.
    return dict(
        w01=w01.astype(bf16), b01=b01,
        w02=w02.astype(bf16), b02=b02,
        w11=w11.astype(bf16), w12=w12.astype(bf16), b1112=b11 + b12,
        w2=w2.astype(bf16), b2=b2,
        wc1f=(wc1 * sc1).astype(bf16), sh1=sh1,
        wc2f=(wc2 * sc2).astype(bf16), sh2=sh2,
    )


def init_dgn_params(key, in_channel=3, out_channel=256):
    ks = jax.random.split(key, 10)
    ec1 = _init_edgeconv(ks[0], in_channel, 64)
    ec2 = _init_edgeconv(ks[1], 64, 64)
    ec3 = _init_edgeconv(ks[2], 64, 64)
    wconv, bconv = _init_linear(ks[3], 3 * 64, 1024)

    # mlp1: Conv1d(1216, 256, 1) -> weight split into x4-part / global-part
    w1_full, b1 = _init_linear(ks[4], 3 * 64 + 1024, 256)
    w1a, w1b = w1_full[:3 * 64], w1_full[3 * 64:]
    s1, t1 = _init_bn(ks[5], 256)
    w2, b2 = _init_linear(ks[6], 256, 256)
    s2, t2 = _init_bn(ks[7], 256)
    w3, b3 = _init_linear(ks[8], 256, 128)
    s3, t3 = _init_bn(ks[9], 128)
    w4, b4 = _init_linear(jax.random.fold_in(key, 99), 128, out_channel)

    bf16 = jnp.bfloat16
    glob = dict(
        wconv=wconv.astype(bf16), bconv=bconv,
        w1bf=(w1b * s1).astype(bf16),        # global-feature part of mlp1, BN1 scale folded
        bias_g=b1 * s1 + t1,                 # mlp1 bias + BN1 shift (added once per batch)
    )
    head = dict(
        w1af=(w1a * s1).astype(bf16),
        w2f=(w2 * s2).astype(bf16), bsh2=b2 * s2 + t2,
        w3f=(w3 * s3).astype(bf16), bsh3=b3 * s3 + t3,
        w4=w4.astype(bf16), b4=b4,
    )
    return dict(ec1=ec1, ec2=ec2, ec3=ec3, glob=glob, head=head)


# ----------------------------------------------------------------------------
if __name__ == "__main__":
    key = jax.random.PRNGKey(0)
    kparam, kx = jax.random.split(key)

    B, C_IN, N = 2, 3, 16
    params = init_dgn_params(kparam, in_channel=C_IN, out_channel=256)
    x = jax.random.normal(kx, (B, C_IN, N), jnp.float32)   # torch-style [B, C, N]

    out = dgn_forward(x, params, k=K_NEIGHBOURS)
    out = jax.block_until_ready(out)
    assert out.shape == (B, N, 256), out.shape
    assert jnp.all(jnp.isfinite(out))
    print("KERNEL_OK")
</pallas_src>

<mosaic_0001>
module attributes {stable_mosaic.version = 11 : i64} {
  func.func @edgeconv_kernel(%arg0: i32, %arg1: i32, %arg2: memref<1x16x3xbf16, #tpu.memory_space<vmem>>, %arg3: memref<1x5x16x3xbf16, #tpu.memory_space<vmem>>, %arg4: memref<3x3xbf16, #tpu.memory_space<vmem>>, %arg5: memref<1x3xf32, #tpu.memory_space<vmem>>, %arg6: memref<3x3xbf16, #tpu.memory_space<vmem>>, %arg7: memref<1x3xf32, #tpu.memory_space<vmem>>, %arg8: memref<3x6xbf16, #tpu.memory_space<vmem>>, %arg9: memref<3x6xbf16, #tpu.memory_space<vmem>>, %arg10: memref<1x6xf32, #tpu.memory_space<vmem>>, %arg11: memref<6x3xbf16, #tpu.memory_space<vmem>>, %arg12: memref<1x3xf32, #tpu.memory_space<vmem>>, %arg13: memref<3x64xbf16, #tpu.memory_space<vmem>>, %arg14: memref<1x64xf32, #tpu.memory_space<vmem>>, %arg15: memref<3x64xbf16, #tpu.memory_space<vmem>>, %arg16: memref<1x64xf32, #tpu.memory_space<vmem>>, %arg17: memref<1x16x64xf32, #tpu.memory_space<vmem>>) attributes {dimension_semantics = [#tpu.dimension_semantics<parallel>, #tpu.dimension_semantics<parallel>], iteration_bounds = array<i64: 2, 1>, scalar_prefetch = 0 : i64, scratch_operands = 0 : i64, tpu.core_type = #tpu.core_type<tc>, window_params = [{transform_indices = @transform_0, window_bounds = array<i64: 1, 16, 3>}, {transform_indices = @transform_1, window_bounds = array<i64: 1, 5, 16, 3>}, {pipeline_mode = #tpu.pipeline_mode<synchronous>, transform_indices = @transform_2, window_bounds = array<i64: 3, 3>}, {pipeline_mode = #tpu.pipeline_mode<synchronous>, transform_indices = @transform_3, window_bounds = array<i64: 1, 3>}, {pipeline_mode = #tpu.pipeline_mode<synchronous>, transform_indices = @transform_4, window_bounds = array<i64: 3, 3>}, {pipeline_mode = #tpu.pipeline_mode<synchronous>, transform_indices = @transform_5, window_bounds = array<i64: 1, 3>}, {pipeline_mode = #tpu.pipeline_mode<synchronous>, transform_indices = @transform_6, window_bounds = array<i64: 3, 6>}, {pipeline_mode = #tpu.pipeline_mode<synchronous>, transform_indices = @transform_7, window_bounds = array<i64: 3, 6>}, {pipeline_mode = #tpu.pipeline_mode<synchronous>, transform_indices = @transform_8, window_bounds = array<i64: 1, 6>}, {pipeline_mode = #tpu.pipeline_mode<synchronous>, transform_indices = @transform_9, window_bounds = array<i64: 6, 3>}, {pipeline_mode = #tpu.pipeline_mode<synchronous>, transform_indices = @transform_10, window_bounds = array<i64: 1, 3>}, {pipeline_mode = #tpu.pipeline_mode<synchronous>, transform_indices = @transform_11, window_bounds = array<i64: 3, 64>}, {pipeline_mode = #tpu.pipeline_mode<synchronous>, transform_indices = @transform_12, window_bounds = array<i64: 1, 64>}, {pipeline_mode = #tpu.pipeline_mode<synchronous>, transform_indices = @transform_13, window_bounds = array<i64: 3, 64>}, {pipeline_mode = #tpu.pipeline_mode<synchronous>, transform_indices = @transform_14, window_bounds = array<i64: 1, 64>}, {transform_indices = @transform_15, window_bounds = array<i64: 1, 16, 64>}]} {
    %c0 = arith.constant 0 : index
    %c0_0 = arith.constant 0 : index
    %c0_1 = arith.constant 0 : index
    %0 = vector.load %arg2[%c0, %c0_0, %c0_1] : memref<1x16x3xbf16, #tpu.memory_space<vmem>>, vector<1x16x3xbf16>
    %1 = vector.shape_cast %0 : vector<1x16x3xbf16> to vector<16x3xbf16>
    %c0_2 = arith.constant 0 : index
    %c0_3 = arith.constant 0 : index
    %c0_4 = arith.constant 0 : index
    %c0_5 = arith.constant 0 : index
    %2 = vector.load %arg3[%c0_2, %c0_3, %c0_4, %c0_5] : memref<1x5x16x3xbf16, #tpu.memory_space<vmem>>, vector<1x5x16x3xbf16>
    %3 = vector.shape_cast %2 : vector<1x5x16x3xbf16> to vector<5x16x3xbf16>
    %4 = vector.shape_cast %3 : vector<5x16x3xbf16> to vector<80x3xbf16>
    %c0_6 = arith.constant 0 : index
    %c0_7 = arith.constant 0 : index
    %5 = vector.load %arg4[%c0_6, %c0_7] : memref<3x3xbf16, #tpu.memory_space<vmem>>, vector<3x3xbf16>
    %cst = arith.constant dense<0.000000e+00> : vector<16x3xf32>
    %6 = tpu.matmul %1, %5, %cst {dimension_numbers = #tpu.dot_dimension_numbers<[1], [0], [0], [1], [0, 0, 1, 1], [], []>} : vector<16x3xbf16>, vector<3x3xbf16>, vector<16x3xf32> -> vector<16x3xf32>
    %c0_8 = arith.constant 0 : index
    %c0_9 = arith.constant 0 : index
    %7 = vector.load %arg5[%c0_8, %c0_9] : memref<1x3xf32, #tpu.memory_space<vmem>>, vector<1x3xf32>
    %8 = vector.broadcast %7 : vector<1x3xf32> to vector<16x3xf32>
    %9 = arith.addf %6, %8 : vector<16x3xf32>
    %10 = arith.truncf %9 : vector<16x3xf32> to vector<16x3xbf16>
    %c0_10 = arith.constant 0 : index
    %c0_11 = arith.constant 0 : index
    %11 = vector.load %arg8[%c0_10, %c0_11] : memref<3x6xbf16, #tpu.memory_space<vmem>>, vector<3x6xbf16>
    %cst_12 = arith.constant dense<0.000000e+00> : vector<16x6xf32>
    %12 = tpu.matmul %10, %11, %cst_12 {dimension_numbers = #tpu.dot_dimension_numbers<[1], [0], [0], [1], [0, 0, 1, 1], [], []>} : vector<16x3xbf16>, vector<3x6xbf16>, vector<16x6xf32> -> vector<16x6xf32>
    %c0_13 = arith.constant 0 : index
    %c0_14 = arith.constant 0 : index
    %13 = vector.load %arg15[%c0_13, %c0_14] : memref<3x64xbf16, #tpu.memory_space<vmem>>, vector<3x64xbf16>
    %cst_15 = arith.constant dense<0.000000e+00> : vector<16x64xf32>
    %14 = tpu.matmul %10, %13, %cst_15 {dimension_numbers = #tpu.dot_dimension_numbers<[1], [0], [0], [1], [0, 0, 1, 1], [], []>} : vector<16x3xbf16>, vector<3x64xbf16>, vector<16x64xf32> -> vector<16x64xf32>
    %c0_16 = arith.constant 0 : index
    %c0_17 = arith.constant 0 : index
    %15 = vector.load %arg16[%c0_16, %c0_17] : memref<1x64xf32, #tpu.memory_space<vmem>>, vector<1x64xf32>
    %16 = vector.broadcast %15 : vector<1x64xf32> to vector<16x64xf32>
    %17 = arith.addf %14, %16 : vector<16x64xf32>
    %cst_18 = arith.constant 0.000000e+00 : f32
    %18 = vector.broadcast %cst_18 : f32 to vector<16x64xf32>
    %19 = arith.maximumf %17, %18 : vector<16x64xf32>
    %c0_19 = arith.constant 0 : index
    %c0_20 = arith.constant 0 : index
    %20 = vector.load %arg6[%c0_19, %c0_20] : memref<3x3xbf16, #tpu.memory_space<vmem>>, vector<3x3xbf16>
    %cst_21 = arith.constant dense<0.000000e+00> : vector<80x3xf32>
    %21 = tpu.matmul %4, %20, %cst_21 {dimension_numbers = #tpu.dot_dimension_numbers<[1], [0], [0], [1], [0, 0, 1, 1], [], []>} : vector<80x3xbf16>, vector<3x3xbf16>, vector<80x3xf32> -> vector<80x3xf32>
    %c0_22 = arith.constant 0 : index
    %c0_23 = arith.constant 0 : index
    %22 = vector.load %arg7[%c0_22, %c0_23] : memref<1x3xf32, #tpu.memory_space<vmem>>, vector<1x3xf32>
    %23 = vector.broadcast %22 : vector<1x3xf32> to vector<80x3xf32>
    %24 = arith.addf %21, %23 : vector<80x3xf32>
    %25 = arith.truncf %24 : vector<80x3xf32> to vector<80x3xbf16>
    %c0_24 = arith.constant 0 : index
    %c0_25 = arith.constant 0 : index
    %26 = vector.load %arg9[%c0_24, %c0_25] : memref<3x6xbf16, #tpu.memory_space<vmem>>, vector<3x6xbf16>
    %cst_26 = arith.constant dense<0.000000e+00> : vector<80x6xf32>
    %27 = tpu.matmul %25, %26, %cst_26 {dimension_numbers = #tpu.dot_dimension_numbers<[1], [0], [0], [1], [0, 0, 1, 1], [], []>} : vector<80x3xbf16>, vector<3x6xbf16>, vector<80x6xf32> -> vector<80x6xf32>
    %28 = vector.shape_cast %27 : vector<80x6xf32> to vector<5x16x6xf32>
    %c0_27 = arith.constant 0 : index
    %c0_28 = arith.constant 0 : index
    %29 = vector.load %arg10[%c0_27, %c0_28] : memref<1x6xf32, #tpu.memory_space<vmem>>, vector<1x6xf32>
    %30 = vector.broadcast %29 : vector<1x6xf32> to vector<16x6xf32>
    %31 = arith.addf %12, %30 : vector<16x6xf32>
    %32 = vector.shape_cast %31 : vector<16x6xf32> to vector<1x16x6xf32>
    %33 = vector.broadcast %32 : vector<1x16x6xf32> to vector<5x16x6xf32>
    %34 = arith.addf %28, %33 : vector<5x16x6xf32>
    %cst_29 = arith.constant 0.000000e+00 : f32
    %35 = vector.broadcast %cst_29 : f32 to vector<5x16x6xf32>
    %36 = arith.cmpf ogt, %34, %35 : vector<5x16x6xf32>
    %cst_30 = arith.constant 0.00999999977 : f32
    %37 = vector.broadcast %cst_30 : f32 to vector<5x16x6xf32>
    %38 = arith.mulf %37, %34 : vector<5x16x6xf32>
    %39 = arith.select %36, %34, %38 : vector<5x16x6xi1>, vector<5x16x6xf32>
    %40 = vector.shape_cast %39 : vector<5x16x6xf32> to vector<80x6xf32>
    %41 = arith.truncf %40 : vector<80x6xf32> to vector<80x6xbf16>
    %c0_31 = arith.constant 0 : index
    %c0_32 = arith.constant 0 : index
    %42 = vector.load %arg11[%c0_31, %c0_32] : memref<6x3xbf16, #tpu.memory_space<vmem>>, vector<6x3xbf16>
    %cst_33 = arith.constant dense<0.000000e+00> : vector<80x3xf32>
    %43 = tpu.matmul %41, %42, %cst_33 {dimension_numbers = #tpu.dot_dimension_numbers<[1], [0], [0], [1], [0, 0, 1, 1], [], []>} : vector<80x6xbf16>, vector<6x3xbf16>, vector<80x3xf32> -> vector<80x3xf32>
    %c0_34 = arith.constant 0 : index
    %c0_35 = arith.constant 0 : index
    %44 = vector.load %arg12[%c0_34, %c0_35] : memref<1x3xf32, #tpu.memory_space<vmem>>, vector<1x3xf32>
    %45 = vector.broadcast %44 : vector<1x3xf32> to vector<80x3xf32>
    %46 = arith.addf %43, %45 : vector<80x3xf32>
    %47 = vector.shape_cast %24 : vector<80x3xf32> to vector<5x16x3xf32>
    %48 = vector.shape_cast %9 : vector<16x3xf32> to vector<1x16x3xf32>
    %49 = vector.broadcast %48 : vector<1x16x3xf32> to vector<5x16x3xf32>
    %50 = arith.subf %47, %49 : vector<5x16x3xf32>
    %51 = vector.shape_cast %46 : vector<80x3xf32> to vector<5x16x3xf32>
    %52 = arith.mulf %50, %51 : vector<5x16x3xf32>
    %53 = vector.shape_cast %52 : vector<5x16x3xf32> to vector<80x3xf32>
    %54 = arith.truncf %53 : vector<80x3xf32> to vector<80x3xbf16>
    %c0_36 = arith.constant 0 : index
    %c0_37 = arith.constant 0 : index
    %55 = vector.load %arg13[%c0_36, %c0_37] : memref<3x64xbf16, #tpu.memory_space<vmem>>, vector<3x64xbf16>
    %cst_38 = arith.constant dense<0.000000e+00> : vector<80x64xf32>
    %56 = tpu.matmul %54, %55, %cst_38 {dimension_numbers = #tpu.dot_dimension_numbers<[1], [0], [0], [1], [0, 0, 1, 1], [], []>} : vector<80x3xbf16>, vector<3x64xbf16>, vector<80x64xf32> -> vector<80x64xf32>
    %c0_39 = arith.constant 0 : index
    %c0_40 = arith.constant 0 : index
    %57 = vector.load %arg14[%c0_39, %c0_40] : memref<1x64xf32, #tpu.memory_space<vmem>>, vector<1x64xf32>
    %58 = vector.broadcast %57 : vector<1x64xf32> to vector<80x64xf32>
    %59 = arith.addf %56, %58 : vector<80x64xf32>
    %cst_41 = arith.constant 0.000000e+00 : f32
    %60 = vector.broadcast %cst_41 : f32 to vector<80x64xf32>
    %61 = arith.maximumf %59, %60 : vector<80x64xf32>
    %62 = vector.shape_cast %61 : vector<80x64xf32> to vector<5x16x64xf32>
    %cst_42 = arith.constant dense<0xFF800000> : vector<16x64xf32>
    %63 = vector.multi_reduction <maximumf>, %62, %cst_42 [0] : vector<5x16x64xf32> to vector<16x64xf32>
    %64 = arith.addf %19, %63 : vector<16x64xf32>
    %c0_43 = arith.constant 0 : index
    %c0_44 = arith.constant 0 : index
    %c0_45 = arith.constant 0 : index
    %65 = vector.load %arg17[%c0_43, %c0_44, %c0_45] : memref<1x16x64xf32, #tpu.memory_space<vmem>>, vector<1x16x64xf32>
    %66 = vector.shape_cast %65 : vector<1x16x64xf32> to vector<16x64xf32>
    %67 = vector.shape_cast %64 : vector<16x64xf32> to vector<1x16x64xf32>
    tpu.vector_store %arg17[%c0_43, %c0_44, %c0_45], %67 {strides = array<i32>} : memref<1x16x64xf32, #tpu.memory_space<vmem>>, vector<1x16x64xf32>,
    return
  }
  func.func @transform_0(%arg0: i32, %arg1: i32) -> (i32, i32, i32) {
    %c0_i32 = arith.constant 0 : i32
    %c0_i32_0 = arith.constant 0 : i32
    return %arg0, %arg1, %c0_i32 : i32, i32, i32
  }
  func.func @transform_1(%arg0: i32, %arg1: i32) -> (i32, i32, i32, i32) {
    %c0_i32 = arith.constant 0 : i32
    %c0_i32_0 = arith.constant 0 : i32
    %c0_i32_1 = arith.constant 0 : i32
    return %arg0, %c0_i32, %arg1, %c0_i32_0 : i32, i32, i32, i32
  }
  func.func @transform_2(%arg0: i32, %arg1: i32) -> (i32, i32) {
    %c0_i32 = arith.constant 0 : i32
    %c0_i32_0 = arith.constant 0 : i32
    %c0_i32_1 = arith.constant 0 : i32
    return %c0_i32, %c0_i32_0 : i32, i32
  }
  func.func @transform_3(%arg0: i32, %arg1: i32) -> (i32, i32) {
    %c0_i32 = arith.constant 0 : i32
    %c0_i32_0 = arith.constant 0 : i32
    %c0_i32_1 = arith.constant 0 : i32
    return %c0_i32, %c0_i32_0 : i32, i32
  }
  func.func @transform_4(%arg0: i32, %arg1: i32) -> (i32, i32) {
    %c0_i32 = arith.constant 0 : i32
    %c0_i32_0 = arith.constant 0 : i32
    %c0_i32_1 = arith.constant 0 : i32
    return %c0_i32, %c0_i32_0 : i32, i32
  }
  func.func @transform_5(%arg0: i32, %arg1: i32) -> (i32, i32) {
    %c0_i32 = arith.constant 0 : i32
    %c0_i32_0 = arith.constant 0 : i32
    %c0_i32_1 = arith.constant 0 : i32
    return %c0_i32, %c0_i32_0 : i32, i32
  }
  func.func @transform_6(%arg0: i32, %arg1: i32) -> (i32, i32) {
    %c0_i32 = arith.constant 0 : i32
    %c0_i32_0 = arith.constant 0 : i32
    %c0_i32_1 = arith.constant 0 : i32
    return %c0_i32, %c0_i32_0 : i32, i32
  }
  func.func @transform_7(%arg0: i32, %arg1: i32) -> (i32, i32) {
    %c0_i32 = arith.constant 0 : i32
    %c0_i32_0 = arith.constant 0 : i32
    %c0_i32_1 = arith.constant 0 : i32
    return %c0_i32, %c0_i32_0 : i32, i32
  }
  func.func @transform_8(%arg0: i32, %arg1: i32) -> (i32, i32) {
    %c0_i32 = arith.constant 0 : i32
    %c0_i32_0 = arith.constant 0 : i32
    %c0_i32_1 = arith.constant 0 : i32
    return %c0_i32, %c0_i32_0 : i32, i32
  }
  func.func @transform_9(%arg0: i32, %arg1: i32) -> (i32, i32) {
    %c0_i32 = arith.constant 0 : i32
    %c0_i32_0 = arith.constant 0 : i32
    %c0_i32_1 = arith.constant 0 : i32
    return %c0_i32, %c0_i32_0 : i32, i32
  }
  func.func @transform_10(%arg0: i32, %arg1: i32) -> (i32, i32) {
    %c0_i32 = arith.constant 0 : i32
    %c0_i32_0 = arith.constant 0 : i32
    %c0_i32_1 = arith.constant 0 : i32
    return %c0_i32, %c0_i32_0 : i32, i32
  }
  func.func @transform_11(%arg0: i32, %arg1: i32) -> (i32, i32) {
    %c0_i32 = arith.constant 0 : i32
    %c0_i32_0 = arith.constant 0 : i32
    %c0_i32_1 = arith.constant 0 : i32
    return %c0_i32, %c0_i32_0 : i32, i32
  }
  func.func @transform_12(%arg0: i32, %arg1: i32) -> (i32, i32) {
    %c0_i32 = arith.constant 0 : i32
    %c0_i32_0 = arith.constant 0 : i32
    %c0_i32_1 = arith.constant 0 : i32
    return %c0_i32, %c0_i32_0 : i32, i32
  }
  func.func @transform_13(%arg0: i32, %arg1: i32) -> (i32, i32) {
    %c0_i32 = arith.constant 0 : i32
    %c0_i32_0 = arith.constant 0 : i32
    %c0_i32_1 = arith.constant 0 : i32
    return %c0_i32, %c0_i32_0 : i32, i32
  }
  func.func @transform_14(%arg0: i32, %arg1: i32) -> (i32, i32) {
    %c0_i32 = arith.constant 0 : i32
    %c0_i32_0 = arith.constant 0 : i32
    %c0_i32_1 = arith.constant 0 : i32
    return %c0_i32, %c0_i32_0 : i32, i32
  }
  func.func @transform_15(%arg0: i32, %arg1: i32) -> (i32, i32, i32) {
    %c0_i32 = arith.constant 0 : i32
    %c0_i32_0 = arith.constant 0 : i32
    return %arg0, %arg1, %c0_i32 : i32, i32, i32
  }
}

</mosaic_0001>

<llo_original>
// kernel: tpu_custom_call.1
$region0: #{tpu_custom_call.1}
  #allocation0 [shape = 'u32[]', space=smem, size = 0x4, offset = 0x4, fixed_abs, tag = 'smem constant byte address 0x4 - core index']
  #allocation1 [shape = 'u32[72,128]{1,0:T(1,128)}', space=vmem, size = 0x9000, scoped, tag = 'internal scratch']
  %s0 = inlined_call_operand.vmem [shape: bf16[2,16,3], index: 0, kind: input, shape index: {}]
  %s1 = inlined_call_operand.vmem [shape: bf16[2,5,16,3], index: 1, kind: input, shape index: {}]
  %s2 = inlined_call_operand.vmem [shape: bf16[3,3], index: 2, kind: input, shape index: {}]
  %s3 = inlined_call_operand.vmem [shape: f32[1,3], index: 3, kind: input, shape index: {}]
  %s4 = inlined_call_operand.vmem [shape: bf16[3,3], index: 4, kind: input, shape index: {}]
  %s5 = inlined_call_operand.vmem [shape: f32[1,3], index: 5, kind: input, shape index: {}]
  %s6 = inlined_call_operand.vmem [shape: bf16[3,6], index: 6, kind: input, shape index: {}]
  %s7 = inlined_call_operand.vmem [shape: bf16[3,6], index: 7, kind: input, shape index: {}]
  %s8 = inlined_call_operand.vmem [shape: f32[1,6], index: 8, kind: input, shape index: {}]
  %s9 = inlined_call_operand.vmem [shape: bf16[6,3], index: 9, kind: input, shape index: {}]
  %s10 = inlined_call_operand.vmem [shape: f32[1,3], index: 10, kind: input, shape index: {}]
  %s11 = inlined_call_operand.vmem [shape: bf16[3,64], index: 11, kind: input, shape index: {}]
  %s12 = inlined_call_operand.vmem [shape: f32[1,64], index: 12, kind: input, shape index: {}]
  %s13 = inlined_call_operand.vmem [shape: bf16[3,64], index: 13, kind: input, shape index: {}]
  %s14 = inlined_call_operand.vmem [shape: f32[1,64], index: 14, kind: input, shape index: {}]
  %s15 = inlined_call_operand.hbm [shape: f32[2,16,64], index: 15, kind: output, shape index: {}]
  %s16 = sld [smem:[#allocation0]]
  $region93: #{tpu_custom_call.1} parent=0
    _
  %s18 = ssub.s32 1, %s16
  %s19 = scalar_select 0, %s18, %s16
  $region1: #{tpu_custom_call.1} parent=0
    #allocation2 [shape = 'u8[16384]{0}', space=vmem, size = 0x4000, scoped, tag = 'output window, operand 0']
    #allocation3 [shape = 's32[2]{0}', space=sflag, size = 0x8, scoped, tag = 'scoped memory for tpu_custom_call.1']
    %20 = vsyncpa [#allocation3], 0
    %s21 = scalar_lea.sflag [#allocation3], 1
    %22 = vsyncpa %s21, 0
    loop: start=0, step=1, limit=4
    $region2: #{tpu_custom_call.1} parent=1 // loop_pre_header
      _
    $region3: #{tpu_custom_call.1} parent=1 // loop_header
      %s24 = sphi 0, %s28
      %p25 = scmp.ge.s32.totalorder %s24, 4
      %s31 = sphi 0, %s43
      %s32 = sphi 0, %s39
      %s33 = sphi 0, %s31
      %s34 = sphi 0, %s32
      %s35 = sphi 0, %s33
      %s36 = sphi 0, %s34
      %s48 = sphi 0, %s50
      %s51 = sphi 0, %s48
      %s52 = sphi 0, %s51
      %s68 = sphi 0, %s52
      %s76 = sphi 0, %s78
      %s79 = sphi 0, %s76
      %s80 = sphi 0, %s79
      %s96 = sphi 0, %s80
      %s100 = sphi 0, %s100
      %s102 = sphi 0, %s100
      %s103 = sphi 0, %s102
      %s117 = sphi 0, %s103
      %s121 = sphi 0, %s121
      %s123 = sphi 0, %s121
      %s124 = sphi 0, %s123
      %s138 = sphi 0, %s124
      %s142 = sphi 0, %s142
      %s144 = sphi 0, %s142
      %s145 = sphi 0, %s144
      %s159 = sphi 0, %s145
      %s163 = sphi 0, %s163
      %s165 = sphi 0, %s163
      %s166 = sphi 0, %s165
      %s180 = sphi 0, %s166
      %s184 = sphi 0, %s184
      %s186 = sphi 0, %s184
      %s187 = sphi 0, %s186
      %s201 = sphi 0, %s187
      %s205 = sphi 0, %s205
      %s207 = sphi 0, %s205
      %s208 = sphi 0, %s207
      %s222 = sphi 0, %s208
      %s226 = sphi 0, %s226
      %s228 = sphi 0, %s226
      %s229 = sphi 0, %s228
      %s243 = sphi 0, %s229
      %s247 = sphi 0, %s247
      %s249 = sphi 0, %s247
      %s250 = sphi 0, %s249
      %s264 = sphi 0, %s250
      %s268 = sphi 0, %s268
      %s270 = sphi 0, %s268
      %s271 = sphi 0, %s270
      %s285 = sphi 0, %s271
      %s289 = sphi 0, %s289
      %s291 = sphi 0, %s289
      %s292 = sphi 0, %s291
      %s306 = sphi 0, %s292
      %s310 = sphi 0, %s310
      %s312 = sphi 0, %s310
      %s313 = sphi 0, %s312
      %s327 = sphi 0, %s313
      %s331 = sphi 0, %s331
      %s333 = sphi 0, %s331
      %s334 = sphi 0, %s333
      %s348 = sphi 0, %s334
      %s352 = sphi 0, %s352
      %s354 = sphi 0, %s352
      %s355 = sphi 0, %s354
      %s369 = sphi 0, %s355
      %s377 = sphi 0, %s379
      %s380 = sphi 0, %s377
      %s381 = sphi 0, %s380
      %s397 = sphi 0, %s381
    $region4: #{tpu_custom_call.1} parent=1 // loop_header_branch
      %27 = sbr.rel (%p25) target = $region8
    $region5: #{tpu_custom_call.1} parent=1 // loop_body
      %s29 = ssub.s32 %s24, 1
      %s30 = ssub.s32 %s24, 2
      %s37 = sadd.s32 1, %s32
      %p38 = scmp.ge.s32.totalorder %s37, 1
      %s39 = scalar_select %p38, 0, %s37
      %s40 = sadd.s32 1, %s31
      %s41 = scalar_select %p38, %s40, %s31
      %p42 = scmp.ge.s32.totalorder %s41, 2
      %s43 = scalar_select %p42, 0, %s41
      %s44 = ssub.s32 %s31, %s43
      %s45 = ssub.s32 %s32, %s39
      %s46 = sor.u32 %s44, %s45
      %p47 = scmp.eq.s32.totalorder %s46, 0
      %s49 = sadd.s32 %s48, 1
      %s50 = scalar_select %p47, %s48, %s49
      %p53 = pneg %p47
      %p54 = scmp.eq.s32.totalorder %s24, 1
      %p55 = por %p53, %p54
      %p56 = scmp.ne.s32.totalorder %s48, %s51
      %p57 = scmp.eq.s32.totalorder %s24, 0
      %p58 = por %p56, %p57
      %p59 = scmp.ne.s32.totalorder %s48, %s51
      %p60 = scmp.eq.s32.totalorder %s29, 1
      %p61 = por %p59, %p60
      %p62 = scmp.ne.s32.totalorder %s51, %s52
      %p63 = scmp.eq.s32.totalorder %s29, 0
      %p64 = por %p62, %p63
      %p65 = scmp.ne.s32.totalorder %s51, %s52
      %p66 = scmp.eq.s32.totalorder %s30, 1
      %p67 = por %p65, %p66
      %p69 = scmp.ne.s32.totalorder %s52, %s68
      %p70 = scmp.eq.s32.totalorder %s30, 0
      %p71 = por %p69, %p70
      %s72 = ssub.s32 %s31, %s43
      %s73 = ssub.s32 %s32, %s39
      %s74 = sor.u32 %s72, %s73
      %p75 = scmp.eq.s32.totalorder %s74, 0
      %s77 = sadd.s32 %s76, 1
      %s78 = scalar_select %p75, %s76, %s77
      %p81 = pneg %p75
      %p82 = scmp.eq.s32.totalorder %s24, 1
      %p83 = por %p81, %p82
      %p84 = scmp.ne.s32.totalorder %s76, %s79
      %p85 = scmp.eq.s32.totalorder %s24, 0
      %p86 = por %p84, %p85
      %p87 = scmp.ne.s32.totalorder %s76, %s79
      %p88 = scmp.eq.s32.totalorder %s29, 1
      %p89 = por %p87, %p88
      %p90 = scmp.ne.s32.totalorder %s79, %s80
      %p91 = scmp.eq.s32.totalorder %s29, 0
      %p92 = por %p90, %p91
      %p93 = scmp.ne.s32.totalorder %s79, %s80
      %p94 = scmp.eq.s32.totalorder %s30, 1
      %p95 = por %p93, %p94
      %p97 = scmp.ne.s32.totalorder %s80, %s96
      %p98 = scmp.eq.s32.totalorder %s30, 0
      %p99 = por %p97, %p98
      %s101 = sadd.s32 %s100, 1
      %p104 = scmp.eq.s32.totalorder %s24, 1
      %p105 = scmp.ne.s32.totalorder %s100, %s102
      %p106 = scmp.eq.s32.totalorder %s24, 0
      %p107 = por %p105, %p106
      %p108 = scmp.ne.s32.totalorder %s100, %s102
      %p109 = scmp.eq.s32.totalorder %s29, 1
      %p110 = por %p108, %p109
      %p111 = scmp.ne.s32.totalorder %s102, %s103
      %p112 = scmp.eq.s32.totalorder %s29, 0
      %p113 = por %p111, %p112
      %p114 = scmp.ne.s32.totalorder %s102, %s103
      %p115 = scmp.eq.s32.totalorder %s30, 1
      %p116 = por %p114, %p115
      %p118 = scmp.ne.s32.totalorder %s103, %s117
      %p119 = scmp.eq.s32.totalorder %s30, 0
      %p120 = por %p118, %p119
      %s122 = sadd.s32 %s121, 1
      %p125 = scmp.eq.s32.totalorder %s24, 1
      %p126 = scmp.ne.s32.totalorder %s121, %s123
      %p127 = scmp.eq.s32.totalorder %s24, 0
      %p128 = por %p126, %p127
      %p129 = scmp.ne.s32.totalorder %s121, %s123
      %p130 = scmp.eq.s32.totalorder %s29, 1
      %p131 = por %p129, %p130
      %p132 = scmp.ne.s32.totalorder %s123, %s124
      %p133 = scmp.eq.s32.totalorder %s29, 0
      %p134 = por %p132, %p133
      %p135 = scmp.ne.s32.totalorder %s123, %s124
      %p136 = scmp.eq.s32.totalorder %s30, 1
      %p137 = por %p135, %p136
      %p139 = scmp.ne.s32.totalorder %s124, %s138
      %p140 = scmp.eq.s32.totalorder %s30, 0
      %p141 = por %p139, %p140
      %s143 = sadd.s32 %s142, 1
      %p146 = scmp.eq.s32.totalorder %s24, 1
      %p147 = scmp.ne.s32.totalorder %s142, %s144
      %p148 = scmp.eq.s32.totalorder %s24, 0
      %p149 = por %p147, %p148
      %p150 = scmp.ne.s32.totalorder %s142, %s144
      %p151 = scmp.eq.s32.totalorder %s29, 1
      %p152 = por %p150, %p151
      %p153 = scmp.ne.s32.totalorder %s144, %s145
      %p154 = scmp.eq.s32.totalorder %s29, 0
      %p155 = por %p153, %p154
      %p156 = scmp.ne.s32.totalorder %s144, %s145
      %p157 = scmp.eq.s32.totalorder %s30, 1
      %p158 = por %p156, %p157
      %p160 = scmp.ne.s32.totalorder %s145, %s159
      %p161 = scmp.eq.s32.totalorder %s30, 0
      %p162 = por %p160, %p161
      %s164 = sadd.s32 %s163, 1
      %p167 = scmp.eq.s32.totalorder %s24, 1
      %p168 = scmp.ne.s32.totalorder %s163, %s165
      %p169 = scmp.eq.s32.totalorder %s24, 0
      %p170 = por %p168, %p169
      %p171 = scmp.ne.s32.totalorder %s163, %s165
      %p172 = scmp.eq.s32.totalorder %s29, 1
      %p173 = por %p171, %p172
      %p174 = scmp.ne.s32.totalorder %s165, %s166
      %p175 = scmp.eq.s32.totalorder %s29, 0
      %p176 = por %p174, %p175
      %p177 = scmp.ne.s32.totalorder %s165, %s166
      %p178 = scmp.eq.s32.totalorder %s30, 1
      %p179 = por %p177, %p178
      %p181 = scmp.ne.s32.totalorder %s166, %s180
      %p182 = scmp.eq.s32.totalorder %s30, 0
      %p183 = por %p181, %p182
      %s185 = sadd.s32 %s184, 1
      %p188 = scmp.eq.s32.totalorder %s24, 1
      %p189 = scmp.ne.s32.totalorder %s184, %s186
      %p190 = scmp.eq.s32.totalorder %s24, 0
      %p191 = por %p189, %p190
      %p192 = scmp.ne.s32.totalorder %s184, %s186
      %p193 = scmp.eq.s32.totalorder %s29, 1
      %p194 = por %p192, %p193
      %p195 = scmp.ne.s32.totalorder %s186, %s187
      %p196 = scmp.eq.s32.totalorder %s29, 0
      %p197 = por %p195, %p196
      %p198 = scmp.ne.s32.totalorder %s186, %s187
      %p199 = scmp.eq.s32.totalorder %s30, 1
      %p200 = por %p198, %p199
      %p202 = scmp.ne.s32.totalorder %s187, %s201
      %p203 = scmp.eq.s32.totalorder %s30, 0
      %p204 = por %p202, %p203
      %s206 = sadd.s32 %s205, 1
      %p209 = scmp.eq.s32.totalorder %s24, 1
      %p210 = scmp.ne.s32.totalorder %s205, %s207
      %p211 = scmp.eq.s32.totalorder %s24, 0
      %p212 = por %p210, %p211
      %p213 = scmp.ne.s32.totalorder %s205, %s207
      %p214 = scmp.eq.s32.totalorder %s29, 1
      %p215 = por %p213, %p214
      %p216 = scmp.ne.s32.totalorder %s207, %s208
      %p217 = scmp.eq.s32.totalorder %s29, 0
      %p218 = por %p216, %p217
      %p219 = scmp.ne.s32.totalorder %s207, %s208
      %p220 = scmp.eq.s32.totalorder %s30, 1
      %p221 = por %p219, %p220
      %p223 = scmp.ne.s32.totalorder %s208, %s222
      %p224 = scmp.eq.s32.totalorder %s30, 0
      %p225 = por %p223, %p224
      %s227 = sadd.s32 %s226, 1
      %p230 = scmp.eq.s32.totalorder %s24, 1
      %p231 = scmp.ne.s32.totalorder %s226, %s228
      %p232 = scmp.eq.s32.totalorder %s24, 0
      %p233 = por %p231, %p232
      %p234 = scmp.ne.s32.totalorder %s226, %s228
      %p235 = scmp.eq.s32.totalorder %s29, 1
      %p236 = por %p234, %p235
      %p237 = scmp.ne.s32.totalorder %s228, %s229
      %p238 = scmp.eq.s32.totalorder %s29, 0
      %p239 = por %p237, %p238
      %p240 = scmp.ne.s32.totalorder %s228, %s229
      %p241 = scmp.eq.s32.totalorder %s30, 1
      %p242 = por %p240, %p241
      %p244 = scmp.ne.s32.totalorder %s229, %s243
      %p245 = scmp.eq.s32.totalorder %s30, 0
      %p246 = por %p244, %p245
      %s248 = sadd.s32 %s247, 1
      %p251 = scmp.eq.s32.totalorder %s24, 1
      %p252 = scmp.ne.s32.totalorder %s247, %s249
      %p253 = scmp.eq.s32.totalorder %s24, 0
      %p254 = por %p252, %p253
      %p255 = scmp.ne.s32.totalorder %s247, %s249
      %p256 = scmp.eq.s32.totalorder %s29, 1
      %p257 = por %p255, %p256
      %p258 = scmp.ne.s32.totalorder %s249, %s250
      %p259 = scmp.eq.s32.totalorder %s29, 0
      %p260 = por %p258, %p259
      %p261 = scmp.ne.s32.totalorder %s249, %s250
      %p262 = scmp.eq.s32.totalorder %s30, 1
      %p263 = por %p261, %p262
      %p265 = scmp.ne.s32.totalorder %s250, %s264
      %p266 = scmp.eq.s32.totalorder %s30, 0
      %p267 = por %p265, %p266
      %s269 = sadd.s32 %s268, 1
      %p272 = scmp.eq.s32.totalorder %s24, 1
      %p273 = scmp.ne.s32.totalorder %s268, %s270
      %p274 = scmp.eq.s32.totalorder %s24, 0
      %p275 = por %p273, %p274
      %p276 = scmp.ne.s32.totalorder %s268, %s270
      %p277 = scmp.eq.s32.totalorder %s29, 1
      %p278 = por %p276, %p277
      %p279 = scmp.ne.s32.totalorder %s270, %s271
      %p280 = scmp.eq.s32.totalorder %s29, 0
      %p281 = por %p279, %p280
      %p282 = scmp.ne.s32.totalorder %s270, %s271
      %p283 = scmp.eq.s32.totalorder %s30, 1
      %p284 = por %p282, %p283
      %p286 = scmp.ne.s32.totalorder %s271, %s285
      %p287 = scmp.eq.s32.totalorder %s30, 0
      %p288 = por %p286, %p287
      %s290 = sadd.s32 %s289, 1
      %p293 = scmp.eq.s32.totalorder %s24, 1
      %p294 = scmp.ne.s32.totalorder %s289, %s291
      %p295 = scmp.eq.s32.totalorder %s24, 0
      %p296 = por %p294, %p295
      %p297 = scmp.ne.s32.totalorder %s289, %s291
      %p298 = scmp.eq.s32.totalorder %s29, 1
      %p299 = por %p297, %p298
      %p300 = scmp.ne.s32.totalorder %s291, %s292
      %p301 = scmp.eq.s32.totalorder %s29, 0
      %p302 = por %p300, %p301
      %p303 = scmp.ne.s32.totalorder %s291, %s292
      %p304 = scmp.eq.s32.totalorder %s30, 1
      %p305 = por %p303, %p304
      %p307 = scmp.ne.s32.totalorder %s292, %s306
      %p308 = scmp.eq.s32.totalorder %s30, 0
      %p309 = por %p307, %p308
      %s311 = sadd.s32 %s310, 1
      %p314 = scmp.eq.s32.totalorder %s24, 1
      %p315 = scmp.ne.s32.totalorder %s310, %s312
      %p316 = scmp.eq.s32.totalorder %s24, 0
      %p317 = por %p315, %p316
      %p318 = scmp.ne.s32.totalorder %s310, %s312
      %p319 = scmp.eq.s32.totalorder %s29, 1
      %p320 = por %p318, %p319
      %p321 = scmp.ne.s32.totalorder %s312, %s313
      %p322 = scmp.eq.s32.totalorder %s29, 0
      %p323 = por %p321, %p322
      %p324 = scmp.ne.s32.totalorder %s312, %s313
      %p325 = scmp.eq.s32.totalorder %s30, 1
      %p326 = por %p324, %p325
      %p328 = scmp.ne.s32.totalorder %s313, %s327
      %p329 = scmp.eq.s32.totalorder %s30, 0
      %p330 = por %p328, %p329
      %s332 = sadd.s32 %s331, 1
      %p335 = scmp.eq.s32.totalorder %s24, 1
      %p336 = scmp.ne.s32.totalorder %s331, %s333
      %p337 = scmp.eq.s32.totalorder %s24, 0
      %p338 = por %p336, %p337
      %p339 = scmp.ne.s32.totalorder %s331, %s333
      %p340 = scmp.eq.s32.totalorder %s29, 1
      %p341 = por %p339, %p340
      %p342 = scmp.ne.s32.totalorder %s333, %s334
      %p343 = scmp.eq.s32.totalorder %s29, 0
      %p344 = por %p342, %p343
      %p345 = scmp.ne.s32.totalorder %s333, %s334
      %p346 = scmp.eq.s32.totalorder %s30, 1
      %p347 = por %p345, %p346
      %p349 = scmp.ne.s32.totalorder %s334, %s348
      %p350 = scmp.eq.s32.totalorder %s30, 0
      %p351 = por %p349, %p350
      %s353 = sadd.s32 %s352, 1
      %p356 = scmp.eq.s32.totalorder %s24, 1
      %p357 = scmp.ne.s32.totalorder %s352, %s354
      %p358 = scmp.eq.s32.totalorder %s24, 0
      %p359 = por %p357, %p358
      %p360 = scmp.ne.s32.totalorder %s352, %s354
      %p361 = scmp.eq.s32.totalorder %s29, 1
      %p362 = por %p360, %p361
      %p363 = scmp.ne.s32.totalorder %s354, %s355
      %p364 = scmp.eq.s32.totalorder %s29, 0
      %p365 = por %p363, %p364
      %p366 = scmp.ne.s32.totalorder %s354, %s355
      %p367 = scmp.eq.s32.totalorder %s30, 1
      %p368 = por %p366, %p367
      %p370 = scmp.ne.s32.totalorder %s355, %s369
      %p371 = scmp.eq.s32.totalorder %s30, 0
      %p372 = por %p370, %p371
      %s373 = ssub.s32 %s31, %s43
      %s374 = ssub.s32 %s32, %s39
      %s375 = sor.u32 %s373, %s374
      %p376 = scmp.eq.s32.totalorder %s375, 0
      %s378 = sadd.s32 %s377, 1
      %s379 = scalar_select %p376, %s377, %s378
      %p382 = pneg %p376
      %p383 = scmp.eq.s32.totalorder %s24, 1
      %p384 = por %p382, %p383
      %p385 = scmp.ne.s32.totalorder %s377, %s380
      %p386 = scmp.eq.s32.totalorder %s24, 0
      %p387 = por %p385, %p386
      %p388 = scmp.ne.s32.totalorder %s377, %s380
      %p389 = scmp.eq.s32.totalorder %s29, 1
      %p390 = por %p388, %p389
      %p391 = scmp.ne.s32.totalorder %s380, %s381
      %p392 = scmp.eq.s32.totalorder %s29, 0
      %p393 = por %p391, %p392
      %p394 = scmp.ne.s32.totalorder %s380, %s381
      %p395 = scmp.eq.s32.totalorder %s30, 1
      %p396 = por %p394, %p395
      %p398 = scmp.ne.s32.totalorder %s381, %s397
      %p399 = scmp.eq.s32.totalorder %s30, 0
      %p400 = por %p398, %p399
      %p401 = scmp.le.s32.totalorder 1, %s24
      %p402 = scmp.lt.s32.totalorder %s24, 3
      %p403 = pnand %p401, %p402
      %p404 = pneg %p403
      // Predicated region
      $region9: #{tpu_custom_call.1} parent=5 // pred_check
        _
      $region10: #{tpu_custom_call.1} parent=5 // pred_check_branch
        %406 = sbr.rel (%p403) target = $region12
      $region11: #{tpu_custom_call.1} parent=5 // pred_region
        %s407 = ssub.s32 %s24, 1
        // Predicated region
        $region13: #{tpu_custom_call.1} parent=11 // pred_check
          %p408 = pneg %p113
        $region14: #{tpu_custom_call.1} parent=11 // pred_check_branch
          %410 = sbr.rel (%p408) target = $region16
        $region15: #{tpu_custom_call.1} parent=11 // pred_region
          _
        $region16: #{tpu_custom_call.1} parent=11 // pred_fallthru
          _
        // Predicated region
        $region17: #{tpu_custom_call.1} parent=11 // pred_check
          %p411 = pneg %p134
        $region18: #{tpu_custom_call.1} parent=11 // pred_check_branch
          %413 = sbr.rel (%p411) target = $region20
        $region19: #{tpu_custom_call.1} parent=11 // pred_region
          _
        $region20: #{tpu_custom_call.1} parent=11 // pred_fallthru
          _
        // Predicated region
        $region21: #{tpu_custom_call.1} parent=11 // pred_check
          %p414 = pneg %p155
        $region22: #{tpu_custom_call.1} parent=11 // pred_check_branch
          %416 = sbr.rel (%p414) target = $region24
        $region23: #{tpu_custom_call.1} parent=11 // pred_region
          _
        $region24: #{tpu_custom_call.1} parent=11 // pred_fallthru
          _
        // Predicated region
        $region25: #{tpu_custom_call.1} parent=11 // pred_check
          %p417 = pneg %p176
        $region26: #{tpu_custom_call.1} parent=11 // pred_check_branch
          %419 = sbr.rel (%p417) target = $region28
        $region27: #{tpu_custom_call.1} parent=11 // pred_region
          _
        $region28: #{tpu_custom_call.1} parent=11 // pred_fallthru
          _
        // Predicated region
        $region29: #{tpu_custom_call.1} parent=11 // pred_check
          %p420 = pneg %p197
        $region30: #{tpu_custom_call.1} parent=11 // pred_check_branch
          %422 = sbr.rel (%p420) target = $region32
        $region31: #{tpu_custom_call.1} parent=11 // pred_region
          _
        $region32: #{tpu_custom_call.1} parent=11 // pred_fallthru
          _
        // Predicated region
        $region33: #{tpu_custom_call.1} parent=11 // pred_check
          %p423 = pneg %p218
        $region34: #{tpu_custom_call.1} parent=11 // pred_check_branch
          %425 = sbr.rel (%p423) target = $region36
        $region35: #{tpu_custom_call.1} parent=11 // pred_region
          _
        $region36: #{tpu_custom_call.1} parent=11 // pred_fallthru
          _
        // Predicated region
        $region37: #{tpu_custom_call.1} parent=11 // pred_check
          %p426 = pneg %p239
        $region38: #{tpu_custom_call.1} parent=11 // pred_check_branch
          %428 = sbr.rel (%p426) target = $region40
        $region39: #{tpu_custom_call.1} parent=11 // pred_region
          _
        $region40: #{tpu_custom_call.1} parent=11 // pred_fallthru
          _
        // Predicated region
        $region41: #{tpu_custom_call.1} parent=11 // pred_check
          %p429 = pneg %p260
        $region42: #{tpu_custom_call.1} parent=11 // pred_check_branch
          %431 = sbr.rel (%p429) target = $region44
        $region43: #{tpu_custom_call.1} parent=11 // pred_region
          _
        $region44: #{tpu_custom_call.1} parent=11 // pred_fallthru
          _
        // Predicated region
        $region45: #{tpu_custom_call.1} parent=11 // pred_check
          %p432 = pneg %p281
        $region46: #{tpu_custom_call.1} parent=11 // pred_check_branch
          %434 = sbr.rel (%p432) target = $region48
        $region47: #{tpu_custom_call.1} parent=11 // pred_region
          _
        $region48: #{tpu_custom_call.1} parent=11 // pred_fallthru
          _
        // Predicated region
        $region49: #{tpu_custom_call.1} parent=11 // pred_check
          %p435 = pneg %p302
        $region50: #{tpu_custom_call.1} parent=11 // pred_check_branch
          %437 = sbr.rel (%p435) target = $region52
        $region51: #{tpu_custom_call.1} parent=11 // pred_region
          _
        $region52: #{tpu_custom_call.1} parent=11 // pred_fallthru
          _
        // Predicated region
        $region53: #{tpu_custom_call.1} parent=11 // pred_check
          %p438 = pneg %p323
        $region54: #{tpu_custom_call.1} parent=11 // pred_check_branch
          %440 = sbr.rel (%p438) target = $region56
        $region55: #{tpu_custom_call.1} parent=11 // pred_region
          _
        $region56: #{tpu_custom_call.1} parent=11 // pred_fallthru
          _
        // Predicated region
        $region57: #{tpu_custom_call.1} parent=11 // pred_check
          %p441 = pneg %p344
        $region58: #{tpu_custom_call.1} parent=11 // pred_check_branch
          %443 = sbr.rel (%p441) target = $region60
        $region59: #{tpu_custom_call.1} parent=11 // pred_region
          _
        $region60: #{tpu_custom_call.1} parent=11 // pred_fallthru
          _
        // Predicated region
        $region61: #{tpu_custom_call.1} parent=11 // pred_check
          %p444 = pneg %p365
        $region62: #{tpu_custom_call.1} parent=11 // pred_check_branch
          %446 = sbr.rel (%p444) target = $region64
        $region63: #{tpu_custom_call.1} parent=11 // pred_region
          _
        $region64: #{tpu_custom_call.1} parent=11 // pred_fallthru
          _
      $region12: #{tpu_custom_call.1} parent=5 // pred_fallthru
        _
      %p447 = scmp.lt.s32.totalorder %s24, 2
      // Predicated region
      $region65: #{tpu_custom_call.1} parent=5 // pred_check
        %p448 = pneg %p447
      $region66: #{tpu_custom_call.1} parent=5 // pred_check_branch
        %450 = sbr.rel (%p448) target = $region68
      $region67: #{tpu_custom_call.1} parent=5 // pred_region
        // Predicated region
        $region69: #{tpu_custom_call.1} parent=67 // pred_check
          %p451 = pneg %p58
        $region70: #{tpu_custom_call.1} parent=67 // pred_check_branch
          %453 = sbr.rel (%p451) target = $region72
        $region71: #{tpu_custom_call.1} parent=67 // pred_region
          %s454 = smul.u32 2, %s32
          %p455 = scmp.lt.s32.totalorder %s31, 1
          %s456 = scalar_select %p455, %s31, 1
          %p457 = scmp.lt.s32.totalorder %s454, 1
          %s458 = scalar_select %p457, %s454, 1
          %s459 = smul.addr %s456, 2
          %s460 = sadd.s32 %s458, %s459
          %s461 = smul.addr %s460, 4
          %s462 = scalar_lea.vmem %s0, %s461
          %s463 = smul.u32 2, %s32
        $region72: #{tpu_custom_call.1} parent=67 // pred_fallthru
          _
        // Predicated region
        $region73: #{tpu_custom_call.1} parent=67 // pred_check
          %p464 = pneg %p86
        $region74: #{tpu_custom_call.1} parent=67 // pred_check_branch
          %466 = sbr.rel (%p464) target = $region76
        $region75: #{tpu_custom_call.1} parent=67 // pred_region
          %s467 = smul.u32 2, %s32
          %p468 = scmp.lt.s32.totalorder %s31, 1
          %s469 = scalar_select %p468, %s31, 1
          %p470 = scmp.lt.s32.totalorder %s467, 1
          %s471 = scalar_select %p470, %s467, 1
          %s472 = smul.addr %s469, 10
          %s473 = sadd.s32 %s471, %s472
          %s474 = smul.addr %s473, 4
          %s475 = scalar_lea.vmem %s1, %s474
          %s476 = smul.u32 2, %s32
        $region76: #{tpu_custom_call.1} parent=67 // pred_fallthru
          _
      $region68: #{tpu_custom_call.1} parent=5 // pred_fallthru
        _
      %p477 = scmp.le.s32.totalorder 1, %s24
      %p478 = scmp.lt.s32.totalorder %s24, 3
      %p479 = pnand %p477, %p478
      %p480 = pneg %p479
      // Predicated region
      $region77: #{tpu_custom_call.1} parent=5 // pred_check
        _
      $region78: #{tpu_custom_call.1} parent=5 // pred_check_branch
        %482 = sbr.rel (%p479) target = $region80
      $region79: #{tpu_custom_call.1} parent=5 // pred_region
        %s483 = ssub.s32 %s24, 1
        %s484 = smul.u32 2, %s34
        %p485 = scmp.lt.s32.totalorder %s33, 1
        %s486 = scalar_select %p485, %s33, 1
        %p487 = scmp.lt.s32.totalorder %s484, 1
        %s488 = scalar_select %p487, %s484, 1
        %s489 = smul.addr %s486, 2
        %s490 = sadd.s32 %s488, %s489
        %s491 = smul.addr %s490, 4
        %s492 = scalar_lea.vmem %s0, %s491
        %p493 = pneg %p64
        %p494 = pneg %p61
        %s495 = smul.u32 2, %s34
        %p496 = scmp.lt.s32.totalorder %s33, 1
        %s497 = scalar_select %p496, %s33, 1
        %p498 = scmp.lt.s32.totalorder %s495, 1
        %s499 = scalar_select %p498, %s495, 1
        %s500 = smul.addr %s497, 10
        %s501 = sadd.s32 %s499, %s500
        %s502 = smul.addr %s501, 4
        %s503 = scalar_lea.vmem %s1, %s502
        %p504 = pneg %p92
        %p505 = pneg %p89
        %p506 = pneg %p113
        %p507 = pneg %p110
        %p508 = pneg %p134
        %p509 = pneg %p131
        %p510 = pneg %p155
        %p511 = pneg %p152
        %p512 = pneg %p176
        %p513 = pneg %p173
        %p514 = pneg %p197
        %p515 = pneg %p194
        %p516 = pneg %p218
        %p517 = pneg %p215
        %p518 = pneg %p239
        %p519 = pneg %p236
        %p520 = pneg %p260
        %p521 = pneg %p257
        %p522 = pneg %p281
        %p523 = pneg %p278
        %p524 = pneg %p302
        %p525 = pneg %p299
        %p526 = pneg %p323
        %p527 = pneg %p320
        %p528 = pneg %p344
        %p529 = pneg %p341
        %p530 = pneg %p365
        %p531 = pneg %p362
        %p532 = pneg %p393
        %p533 = pneg %p390
        %s534 = sand.u32 %s380, 1
        %s535 = scalar_lea.sflag [#allocation3], %s534
        %s536 = sand.u32 %s380, 1
        %s537 = smul.addr %s536, 16
        %s538 = scalar_lea.vmem [#allocation2], %s537
        %s539 = smul.u32 2, %s34
        %p540 = scmp.lt.s32.totalorder %s33, 1
        %s541 = scalar_select %p540, %s33, 1
        %p542 = scmp.lt.s32.totalorder %s539, 1
        %s543 = scalar_select %p542, %s539, 1
        %s544 = smul.addr %s541, 2
        %s545 = sadd.s32 %s543, %s544
        %s546 = smul.addr %s545, 4
        %s547 = scalar_lea.vmem %s0, %s546
        %s548 = smul.u32 2, %s34
        %s549 = smul.u32 2, %s34
        %p550 = scmp.lt.s32.totalorder %s33, 1
        %s551 = scalar_select %p550, %s33, 1
        %p552 = scmp.lt.s32.totalorder %s549, 1
        %s553 = scalar_select %p552, %s549, 1
        %s554 = smul.addr %s551, 10
        %s555 = sadd.s32 %s553, %s554
        %s556 = smul.addr %s555, 4
        %s557 = scalar_lea.vmem %s1, %s556
        %s558 = smul.u32 2, %s34
        %s559 = smul.u32 2, %s34
        %v561 = vld [vmem:[%s547] sm:$0xf]
        %v562 = vld [vmem:[%s547 + $0x4] sm:$0xf]
        %v563 = vld [vmem:[%s557] sm:$0xf]
        %v564 = vld [vmem:[%s557 + $0x4] sm:$0xf]
        %v565 = vld [vmem:[%s557 + $0x8] sm:$0xf]
        %v566 = vld [vmem:[%s557 + $0xc] sm:$0xf]
        %v567 = vld [vmem:[%s557 + $0x10] sm:$0xf]
        %v568 = vld [vmem:[%s557 + $0x14] sm:$0xf]
        %v569 = vld [vmem:[%s557 + $0x18] sm:$0xf]
        %v570 = vld [vmem:[%s557 + $0x1c] sm:$0xf]
        %v571 = vld [vmem:[%s557 + $0x20] sm:$0xf]
        %v572 = vld [vmem:[%s557 + $0x24] sm:$0xf]
        %v573 = vld [vmem:[%s2] sm:$0x3]
        %v574 = vld [vmem:[%s3] sm:$0x1]
        %v576 = vperm.slane %v574, 0
        %v580 = vunpack.c.l.b16 %v561
        %v581 = vunpack.c.l.b16 %v562
        %v582 = vpack.c.b16 %v581, %v580
        %vm583 = vcmask 23552
        %v585 = vsel %vm583, %v582, 0
        %vm587 = vcmask 1040384
        %vm588 = vcmask 1041408
        %v589 = vsel %vm587, 4294967295, 65535
        %v590 = vsel %vm588, %v589, 0
        %v592 = vand.u32 %v573, %v590
        %594 = vmatpush.bf16.msra.mxu0 0
        %595 = vmatpush.bf16.msra.mxu0 0
        %596 = vmatpush.bf16.msra.mxu0 0
        %597 = vmatpush.bf16.msra.mxu0 0
        %598 = vmatpush.bf16.msra.mxu0 0
        %599 = vmatpush.bf16.msra.mxu0 0
        %600 = vmatpush.bf16.msra.mxu0 0
        %601 = vmatpush.bf16.msra.mxu0 %v592
        %602 = vmatmul.bf16.gmra.mxu0 %v585
        %v603 = vpop.f32.mrf.mxu0
        %v604 = vadd.f32 %v576, %v603
        %v605 = vpop.f32.mrf.mxu0
        %v606 = vadd.f32 %v576, %v605
        %607 = vdwg.mxu0
        %v608 = vpack.c.bf16 %v606, %v604
        %v609 = vld [vmem:[%s6] sm:$0x3]
        %v610 = vld [vmem:[%s13] sm:$0x3]
        %v611 = vld [vmem:[%s14] sm:$0x1]
        %v613 = vperm.slane %v611, 0
        %v616 = vsel %vm583, %v608, 0
        %v619 = vand.u32 %v610, %v590
        %621 = vmatpush.bf16.msra.mxu0 0
        %622 = vmatpush.bf16.msra.mxu0 0
        %623 = vmatpush.bf16.msra.mxu0 0
        %624 = vmatpush.bf16.msra.mxu0 0
        %625 = vmatpush.bf16.msra.mxu0 0
        %626 = vmatpush.bf16.msra.mxu0 0
        %627 = vmatpush.bf16.msra.mxu0 0
        %628 = vmatpush.bf16.msra.mxu0 %v619
        %629 = vmatmul.bf16.gmra.mxu0 %v616
        %v630 = vpop.f32.mrf.mxu0
        %v631 = vadd.f32 %v613, %v630
        %v632 = vpop.f32.mrf.mxu0
        %v633 = vadd.f32 %v613, %v632
        %634 = vdwg.mxu0
        %v635 = vmax.f32 %v631, 0.0
        %v636 = vmax.f32 %v633, 0.0
        %v637 = vld [vmem:[%s4] sm:$0x3]
        %v638 = vld [vmem:[%s5] sm:$0x1]
        %v640 = vperm.slane %v638, 0
        %v652 = vunpack.c.l.b16 %v563
        %v653 = vunpack.c.l.b16 %v564
        %v654 = vunpack.c.l.b16 %v565
        %v655 = vunpack.c.l.b16 %v566
        %v656 = vunpack.c.l.b16 %v567
        %v657 = vunpack.c.l.b16 %v568
        %v658 = vunpack.c.l.b16 %v569
        %v659 = vunpack.c.l.b16 %v570
        %v660 = vunpack.c.l.b16 %v571
        %v661 = vunpack.c.l.b16 %v572
        %v662 = vpack.c.b16 %v653, %v652
        %v663 = vpack.c.b16 %v655, %v654
        %v664 = vpack.c.b16 %v657, %v656
        %v665 = vpack.c.b16 %v659, %v658
        %v666 = vpack.c.b16 %v661, %v660
        %v668 = vsel %vm583, %v662, 0
        %v671 = vsel %vm583, %v663, 0
        %v674 = vsel %vm583, %v664, 0
        %v677 = vsel %vm583, %v665, 0
        %v680 = vsel %vm583, %v666, 0
        %v683 = vand.u32 %v637, %v590
        %685 = vmatpush.bf16.msra.mxu0 0
        %686 = vmatpush.bf16.msra.mxu0 0
        %687 = vmatpush.bf16.msra.mxu0 0
        %688 = vmatpush.bf16.msra.mxu0 0
        %689 = vmatpush.bf16.msra.mxu0 0
        %690 = vmatpush.bf16.msra.mxu0 0
        %691 = vmatpush.bf16.msra.mxu0 0
        %692 = vmatpush.bf16.msra.mxu0 %v683
        %693 = vmatmul.bf16.gmra.mxu0 %v668
        %v694 = vpop.f32.mrf.mxu0
        %v695 = vadd.f32 %v640, %v694
        %v696 = vpop.f32.mrf.mxu0
        %v697 = vadd.f32 %v640, %v696
        %698 = vmatmul.bf16.gmra.mxu0 %v671
        %v699 = vpop.f32.mrf.mxu0
        %v700 = vadd.f32 %v640, %v699
        %v701 = vpop.f32.mrf.mxu0
        %v702 = vadd.f32 %v640, %v701
        %703 = vmatmul.bf16.gmra.mxu0 %v674
        %v704 = vpop.f32.mrf.mxu0
        %v705 = vadd.f32 %v640, %v704
        %v706 = vpop.f32.mrf.mxu0
        %v707 = vadd.f32 %v640, %v706
        %708 = vmatmul.bf16.gmra.mxu0 %v677
        %v709 = vpop.f32.mrf.mxu0
        %v710 = vadd.f32 %v640, %v709
        %v711 = vpop.f32.mrf.mxu0
        %v712 = vadd.f32 %v640, %v711
        %713 = vmatmul.bf16.gmra.mxu0 %v680
        %v714 = vpop.f32.mrf.mxu0
        %v715 = vadd.f32 %v640, %v714
        %v716 = vpop.f32.mrf.mxu0
        %v717 = vadd.f32 %v640, %v716
        %718 = vdwg.mxu0
        %v719 = vpack.c.bf16 %v697, %v695
        %v720 = vpack.c.bf16 %v702, %v700
        %v721 = vpack.c.bf16 %v707, %v705
        %v722 = vpack.c.bf16 %v712, %v710
        %v723 = vpack.c.bf16 %v717, %v715
        %v724 = vld [vmem:[%s7] sm:$0x3]
        %v726 = vsel %vm583, %v719, 0
        %v729 = vsel %vm583, %v720, 0
        %v732 = vsel %vm583, %v721, 0
        %v735 = vsel %vm583, %v722, 0
        %v738 = vsel %vm583, %v723, 0
        %v741 = vand.u32 %v724, %v590
        %743 = vmatpush.bf16.msra.mxu0 0
        %744 = vmatpush.bf16.msra.mxu0 0
        %745 = vmatpush.bf16.msra.mxu0 0
        %746 = vmatpush.bf16.msra.mxu0 0
        %747 = vmatpush.bf16.msra.mxu0 0
        %748 = vmatpush.bf16.msra.mxu0 0
        %749 = vmatpush.bf16.msra.mxu0 0
        %750 = vmatpush.bf16.msra.mxu0 %v741
        %751 = vmatmul.bf16.gmra.mxu0 %v726
        %v752 = vpop.f32.mrf.mxu0
        %v753 = vadd.f32 0.0, %v752
        %v754 = vpop.f32.mrf.mxu0
        %v755 = vadd.f32 0.0, %v754
        %756 = vmatmul.bf16.gmra.mxu0 %v729
        %v757 = vpop.f32.mrf.mxu0
        %v758 = vadd.f32 0.0, %v757
        %v759 = vpop.f32.mrf.mxu0
        %v760 = vadd.f32 0.0, %v759
        %761 = vmatmul.bf16.gmra.mxu0 %v732
        %v762 = vpop.f32.mrf.mxu0
        %v763 = vadd.f32 0.0, %v762
        %v764 = vpop.f32.mrf.mxu0
        %v765 = vadd.f32 0.0, %v764
        %766 = vmatmul.bf16.gmra.mxu0 %v735
        %v767 = vpop.f32.mrf.mxu0
        %v768 = vadd.f32 0.0, %v767
        %v769 = vpop.f32.mrf.mxu0
        %v770 = vadd.f32 0.0, %v769
        %771 = vmatmul.bf16.gmra.mxu0 %v738
        %v772 = vpop.f32.mrf.mxu0
        %v773 = vadd.f32 0.0, %v772
        %v774 = vpop.f32.mrf.mxu0
        %v775 = vadd.f32 0.0, %v774
        %776 = vdwg.mxu0
        %v777 = vld [vmem:[%s8] sm:$0x1]
        %v779 = vperm.slane %v777, 0
        %v782 = vand.u32 %v609, %v590
        %784 = vmatpush.bf16.msra.mxu0 0
        %785 = vmatpush.bf16.msra.mxu0 0
        %786 = vmatpush.bf16.msra.mxu0 0
        %787 = vmatpush.bf16.msra.mxu0 0
        %788 = vmatpush.bf16.msra.mxu0 0
        %789 = vmatpush.bf16.msra.mxu0 0
        %790 = vmatpush.bf16.msra.mxu0 0
        %791 = vmatpush.bf16.msra.mxu0 %v782
        %792 = vmatmul.bf16.gmra.mxu0 %v616
        %v793 = vpop.f32.mrf.mxu0
        %v794 = vadd.f32 %v779, %v793
        %v795 = vpop.f32.mrf.mxu0
        %v796 = vadd.f32 %v779, %v795
        %797 = vdwg.mxu0
        %v798 = vadd.f32 %v753, %v794
        %v799 = vadd.f32 %v755, %v796
        %v800 = vadd.f32 %v758, %v794
        %v801 = vadd.f32 %v760, %v796
        %v802 = vadd.f32 %v763, %v794
        %v803 = vadd.f32 %v765, %v796
        %v804 = vadd.f32 %v768, %v794
        %v805 = vadd.f32 %v770, %v796
        %v806 = vadd.f32 %v773, %v794
        %v807 = vadd.f32 %v775, %v796
        %vm808 = vcmp.gt.f32.partialorder %v798, 0.0
        %vm809 = vcmp.gt.f32.partialorder %v799, 0.0
        %vm810 = vcmp.gt.f32.partialorder %v800, 0.0
        %vm811 = vcmp.gt.f32.partialorder %v801, 0.0
        %vm812 = vcmp.gt.f32.partialorder %v802, 0.0
        %vm813 = vcmp.gt.f32.partialorder %v803, 0.0
        %vm814 = vcmp.gt.f32.partialorder %v804, 0.0
        %vm815 = vcmp.gt.f32.partialorder %v805, 0.0
        %vm816 = vcmp.gt.f32.partialorder %v806, 0.0
        %vm817 = vcmp.gt.f32.partialorder %v807, 0.0
        %v818 = vmul.f32 %v798, 0.01
        %v819 = vmul.f32 %v799, 0.01
        %v820 = vmul.f32 %v800, 0.01
        %v821 = vmul.f32 %v801, 0.01
        %v822 = vmul.f32 %v802, 0.01
        %v823 = vmul.f32 %v803, 0.01
        %v824 = vmul.f32 %v804, 0.01
        %v825 = vmul.f32 %v805, 0.01
        %v826 = vmul.f32 %v806, 0.01
        %v827 = vmul.f32 %v807, 0.01
        %v828 = vsel %vm808, %v798, %v818
        %v829 = vsel %vm809, %v799, %v819
        %v830 = vsel %vm810, %v800, %v820
        %v831 = vsel %vm811, %v801, %v821
        %v832 = vsel %vm812, %v802, %v822
        %v833 = vsel %vm813, %v803, %v823
        %v834 = vsel %vm814, %v804, %v824
        %v835 = vsel %vm815, %v805, %v825
        %v836 = vsel %vm816, %v806, %v826
        %v837 = vsel %vm817, %v807, %v827
        %v838 = vpack.c.bf16 %v829, %v828
        %v839 = vpack.c.bf16 %v831, %v830
        %v840 = vpack.c.bf16 %v833, %v832
        %v841 = vpack.c.bf16 %v835, %v834
        %v842 = vpack.c.bf16 %v837, %v836
        %v843 = vld [vmem:[%s9] sm:$0x7]
        %v844 = vld [vmem:[%s10] sm:$0x1]
        %v846 = vperm.slane %v844, 0
        %vm848 = vcmask 48128
        %v850 = vsel %vm848, %v838, 0
        %v853 = vsel %vm848, %v839, 0
        %v856 = vsel %vm848, %v840, 0
        %v859 = vsel %vm848, %v841, 0
        %v862 = vsel %vm848, %v842, 0
        %vm864 = vcmask 1042432
        %v866 = vsel %vm864, %v843, 0
        %868 = vmatpush.bf16.msra.mxu0 0
        %869 = vmatpush.bf16.msra.mxu0 0
        %870 = vmatpush.bf16.msra.mxu0 0
        %871 = vmatpush.bf16.msra.mxu0 0
        %872 = vmatpush.bf16.msra.mxu0 0
        %873 = vmatpush.bf16.msra.mxu0 0
        %874 = vmatpush.bf16.msra.mxu0 0
        %875 = vmatpush.bf16.msra.mxu0 %v866
        %876 = vmatmul.bf16.gmra.mxu0 %v850
        %v877 = vpop.f32.mrf.mxu0
        %v878 = vadd.f32 %v846, %v877
        %v879 = vpop.f32.mrf.mxu0
        %v880 = vadd.f32 %v846, %v879
        %881 = vmatmul.bf16.gmra.mxu0 %v853
        %v882 = vpop.f32.mrf.mxu0
        %v883 = vadd.f32 %v846, %v882
        %v884 = vpop.f32.mrf.mxu0
        %v885 = vadd.f32 %v846, %v884
        %886 = vmatmul.bf16.gmra.mxu0 %v856
        %v887 = vpop.f32.mrf.mxu0
        %v888 = vadd.f32 %v846, %v887
        %v889 = vpop.f32.mrf.mxu0
        %v890 = vadd.f32 %v846, %v889
        %891 = vmatmul.bf16.gmra.mxu0 %v859
        %v892 = vpop.f32.mrf.mxu0
        %v893 = vadd.f32 %v846, %v892
        %v894 = vpop.f32.mrf.mxu0
        %v895 = vadd.f32 %v846, %v894
        %896 = vmatmul.bf16.gmra.mxu0 %v862
        %v897 = vpop.f32.mrf.mxu0
        %v898 = vadd.f32 %v846, %v897
        %v899 = vpop.f32.mrf.mxu0
        %v900 = vadd.f32 %v846, %v899
        %901 = vdwg.mxu0
        %v902 = vsub.f32 %v695, %v604
        %v903 = vsub.f32 %v697, %v606
        %v904 = vsub.f32 %v700, %v604
        %v905 = vsub.f32 %v702, %v606
        %v906 = vsub.f32 %v705, %v604
        %v907 = vsub.f32 %v707, %v606
        %v908 = vsub.f32 %v710, %v604
        %v909 = vsub.f32 %v712, %v606
        %v910 = vsub.f32 %v715, %v604
        %v911 = vsub.f32 %v717, %v606
        %v912 = vmul.f32 %v902, %v878
        %v913 = vmul.f32 %v903, %v880
        %v914 = vmul.f32 %v904, %v883
        %v915 = vmul.f32 %v905, %v885
        %v916 = vmul.f32 %v906, %v888
        %v917 = vmul.f32 %v907, %v890
        %v918 = vmul.f32 %v908, %v893
        %v919 = vmul.f32 %v909, %v895
        %v920 = vmul.f32 %v910, %v898
        %v921 = vmul.f32 %v911, %v900
        %v922 = vpack.c.bf16 %v913, %v912
        %v923 = vpack.c.bf16 %v915, %v914
        %v924 = vpack.c.bf16 %v917, %v916
        %v925 = vpack.c.bf16 %v919, %v918
        %v926 = vpack.c.bf16 %v921, %v920
        %v927 = vld [vmem:[%s11] sm:$0x3]
        %v928 = vld [vmem:[%s12] sm:$0x1]
        %v930 = vperm.slane %v928, 0
        %v933 = vsel %vm583, %v922, 0
        %v936 = vsel %vm583, %v923, 0
        %v939 = vsel %vm583, %v924, 0
        %v942 = vsel %vm583, %v925, 0
        %v945 = vsel %vm583, %v926, 0
        %v948 = vand.u32 %v927, %v590
        %950 = vmatpush.bf16.msra.mxu0 0
        %951 = vmatpush.bf16.msra.mxu0 0
        %952 = vmatpush.bf16.msra.mxu0 0
        %953 = vmatpush.bf16.msra.mxu0 0
        %954 = vmatpush.bf16.msra.mxu0 0
        %955 = vmatpush.bf16.msra.mxu0 0
        %956 = vmatpush.bf16.msra.mxu0 0
        %957 = vmatpush.bf16.msra.mxu0 %v948
        %958 = vmatmul.bf16.gmra.mxu0 %v933
        %v959 = vpop.f32.mrf.mxu0
        %v960 = vadd.f32 %v930, %v959
        %v961 = vpop.f32.mrf.mxu0
        %v962 = vadd.f32 %v930, %v961
        %963 = vmatmul.bf16.gmra.mxu0 %v936
        %v964 = vpop.f32.mrf.mxu0
        %v965 = vadd.f32 %v930, %v964
        %v966 = vpop.f32.mrf.mxu0
        %v967 = vadd.f32 %v930, %v966
        %968 = vmatmul.bf16.gmra.mxu0 %v939
        %v969 = vpop.f32.mrf.mxu0
        %v970 = vadd.f32 %v930, %v969
        %v971 = vpop.f32.mrf.mxu0
        %v972 = vadd.f32 %v930, %v971
        %973 = vmatmul.bf16.gmra.mxu0 %v942
        %v974 = vpop.f32.mrf.mxu0
        %v975 = vadd.f32 %v930, %v974
        %v976 = vpop.f32.mrf.mxu0
        %v977 = vadd.f32 %v930, %v976
        %978 = vmatmul.bf16.gmra.mxu0 %v945
        %v979 = vpop.f32.mrf.mxu0
        %v980 = vadd.f32 %v930, %v979
        %v981 = vpop.f32.mrf.mxu0
        %v982 = vadd.f32 %v930, %v981
        %983 = vdwg.mxu0
        %v984 = vmax.f32 %v960, 0.0
        %v985 = vmax.f32 %v962, 0.0
        %v986 = vmax.f32 %v965, 0.0
        %v987 = vmax.f32 %v967, 0.0
        %v988 = vmax.f32 %v970, 0.0
        %v989 = vmax.f32 %v972, 0.0
        %v990 = vmax.f32 %v975, 0.0
        %v991 = vmax.f32 %v977, 0.0
        %v992 = vmax.f32 %v980, 0.0
        %v993 = vmax.f32 %v982, 0.0
        %vm994 = vcmask 523264
        %v995 = vsel %vm994, %v984, -inf
        %v996 = vsel %vm994, %v986, -inf
        %v997 = vsel %vm994, %v988, -inf
        %v998 = vmax.f32 %v995, %v997
        %v999 = vsel %vm994, %v990, -inf
        %v1000 = vmax.f32 %v996, %v999
        %v1001 = vsel %vm994, %v992, -inf
        %v1002 = vmax.f32 %v998, %v1001
        %v1003 = vmax.f32 %v1002, %v1000
        %v1004 = vsel %vm994, %v985, -inf
        %v1005 = vsel %vm994, %v987, -inf
        %v1006 = vsel %vm994, %v989, -inf
        %v1007 = vmax.f32 %v1004, %v1006
        %v1008 = vsel %vm994, %v991, -inf
        %v1009 = vmax.f32 %v1005, %v1008
        %v1010 = vsel %vm994, %v993, -inf
        %v1011 = vmax.f32 %v1007, %v1010
        %v1012 = vmax.f32 %v1011, %v1009
        %v1013 = vadd.f32 %v635, %v1003
        %v1014 = vadd.f32 %v636, %v1012
        %1015 = vst.msk [vmem:[%s538] sm:$0xff] %vm994, %v1013
        %1016 = vst.msk [vmem:[%s538 + $0x8] sm:$0xff] %vm994, %v1014
        %s1017 = sand.u32 %s380, 1
        %s1018 = scalar_lea.sflag [#allocation3], %s1017
        %s1019 = sand.u32 %s380, 1
        %s1020 = smul.addr %s1019, 16
        %s1021 = scalar_lea.vmem [#allocation2], %s1020
        // Predicated region
        $region81: #{tpu_custom_call.1} parent=79 // pred_check
          %p1022 = pneg %p390
        $region82: #{tpu_custom_call.1} parent=79 // pred_check_branch
          %1024 = sbr.rel (%p1022) target = $region84
        $region83: #{tpu_custom_call.1} parent=79 // pred_region
          %s1025 = smul.u32 2, %s34
          %1027 = vsyncadd %s1018, 0
          %s1028 = smul.addr %s33, 2
          %s1029 = sadd.s32 %s1025, %s1028
          %s1030 = smul.addr %s1029, 8
          %s1031 = scalar_lea.hbm %s15, %s1030
          %s1032 = sshll.u32 %s1021, 4
          %s1033 = int_to_ptr.vmem [resolvable:$true] %s1032
          %s1034 = sshll.u32 %s1031, 4
          %s1035 = int_to_ptr.hbm [resolvable:$true] %s1034
          %1040 = dma.vmem_to_hbm [thread:$0]  %s1033, 256, %s1035, %s1018, 128, 128, 8
        $region84: #{tpu_custom_call.1} parent=79 // pred_fallthru
          _
      $region80: #{tpu_custom_call.1} parent=5 // pred_fallthru
        _
      %p1041 = scmp.le.s32.totalorder 2, %s24
      // Predicated region
      $region85: #{tpu_custom_call.1} parent=5 // pred_check
        %p1042 = pneg %p1041
      $region86: #{tpu_custom_call.1} parent=5 // pred_check_branch
        %1044 = sbr.rel (%p1042) target = $region88
      $region87: #{tpu_custom_call.1} parent=5 // pred_region
        %s1045 = ssub.s32 %s24, 2
        // Predicated region
        $region89: #{tpu_custom_call.1} parent=87 // pred_check
          %p1046 = pneg %p396
        $region90: #{tpu_custom_call.1} parent=87 // pred_check_branch
          %1048 = sbr.rel (%p1046) target = $region92
        $region91: #{tpu_custom_call.1} parent=87 // pred_region
          %s1049 = sand.u32 %s381, 1
          %s1050 = scalar_lea.sflag [#allocation3], %s1049
          %s1051 = sand.u32 %s381, 1
          %s1052 = smul.addr %s1051, 16
          %s1053 = scalar_lea.vmem [#allocation2], %s1052
          %1055 = dma.done %s1050, 256
        $region92: #{tpu_custom_call.1} parent=87 // pred_fallthru
          _
      $region88: #{tpu_custom_call.1} parent=5 // pred_fallthru
        _
    $region6: #{tpu_custom_call.1} parent=1 // loop_footer
      %s28 = sadd.s32 1, %s24
    $region7: #{tpu_custom_call.1} parent=1 // loop_footer_branch
      %23 = sbr.rel target = $region3
    $region8: #{tpu_custom_call.1} parent=1 // loop_exit
      _
    %1056 = vsyncpa [#allocation3], 1
    %s1057 = scalar_lea.sflag [#allocation3], 1
    %1058 = vsyncpa %s1057, 1

</llo_original>
